<compile_context>
chip_gen: v5e
topology: v5e:2x2
jax: 0.10.0
libtpu: 0.0.40
codegen_flags: <defaults>
</compile_context>

<pallas_src>
import jax
import jax.numpy as jnp
from jax.experimental import pallas as pl
from jax.experimental.pallas import tpu as pltpu

# TD-Gammon canonical sizes.
NUM_TDGAMMON_FEATURES = 198
NUM_TDGAMMON1_HIDDEN = 40
NUM_TDGAMMON_OUTPUT = 1

# Batch-tile upper bound: 2048 rows keeps the streamed x tile at 1 MiB
# (2 MiB double-buffered) -- at the HBM roofline, and well under the default
# scoped VMEM limit even on v7x (64 MiB physical).
_TB_MAX = 2048


def _tdgammon_kernel(x_ref, w1_ref, b1_ref, w2_ref, b2_ref, o_ref):
    # Hidden layer: MXU matmul (bf16 inputs, f32 accumulation) + bias + sigmoid.
    h = jnp.dot(x_ref[...], w1_ref[...], preferred_element_type=jnp.float32)
    h = jax.nn.sigmoid(h + b1_ref[...])                       # (TB, H) f32
    # Output layer (O == 1): VPU multiply + lane reduction instead of an MXU
    # matmul that would use a single result column, then bias + sigmoid.
    y = jnp.sum(h * w2_ref[...], axis=-1, keepdims=True) + b2_ref[...]
    o_ref[...] = jax.nn.sigmoid(y).astype(o_ref.dtype)        # (TB, 1)


def tdgammon_forward(x, w1, b1, w2, b2):
    """Forward pass.

    Args:
      x:  (B, F) float activations.
      w1: (F, H) hidden weights (transposed vs. PyTorch), b1: (H,) or (1, H).
      w2: (H, O) output weights (O must be 1),            b2: (O,) or (1, O).
    Returns:
      (B, O) float32 sigmoid outputs.
    """
    B, F = x.shape
    H = w1.shape[1]
    O = w2.shape[1]
    assert O == NUM_TDGAMMON_OUTPUT == 1, "kernel specialised to O == 1"

    # ---- Wrapper-side layout prep ------------------------------------------
    # Lane-align the contraction: zero-pad features (198 -> 256). Zero rows of
    # w1 / zero cols of x leave the matmul result unchanged.
    f_pad = pl.cdiv(F, 128) * 128
    if f_pad != F:
        x_p = jnp.pad(x, ((0, 0), (0, f_pad - F)))
        w1_p = jnp.pad(w1, ((0, f_pad - F), (0, 0)))
    else:
        x_p, w1_p = x, w1

    # Batch tile (multiple of 8 sublanes); pad batch to a tile multiple so the
    # grid divides exactly (padded rows are computed and sliced away).
    tb = min(_TB_MAX, pl.cdiv(B, 8) * 8)
    b_pad = pl.cdiv(B, tb) * tb
    if b_pad != B:
        x_p = jnp.pad(x_p, ((0, b_pad - B), (0, 0)))

    # Stream the mem-bound operands in bf16; keep the rest (and all math after
    # the MXU accumulate) in f32.
    x_p = x_p.astype(jnp.bfloat16)
    w1_p = w1_p.astype(jnp.bfloat16)
    b1_r = b1.reshape(1, H).astype(jnp.float32)
    w2_r = w2.reshape(H, O).T.astype(jnp.float32)     # (1, H) row for VPU path
    b2_r = b2.reshape(1, O).astype(jnp.float32)       # (1, 1)

    grid = (b_pad // tb,)
    cost = pl.CostEstimate(
        flops=2 * b_pad * f_pad * H + 2 * b_pad * H * O,
        transcendentals=b_pad * (H + O),
        bytes_accessed=(x_p.size * 2 + w1_p.size * 2
                        + (b1_r.size + w2_r.size + b2_r.size) * 4
                        + b_pad * O * 4),
    )

    out = pl.pallas_call(
        _tdgammon_kernel,
        out_shape=jax.ShapeDtypeStruct((b_pad, O), jnp.float32),
        grid=grid,
        in_specs=[
            pl.BlockSpec((tb, f_pad), lambda i: (i, 0)),    # x: streamed tiles
            pl.BlockSpec((f_pad, H), lambda i: (0, 0)),     # w1: VMEM-resident
            pl.BlockSpec((1, H), lambda i: (0, 0)),         # b1
            pl.BlockSpec((1, H), lambda i: (0, 0)),         # w2 row
            pl.BlockSpec((1, O), lambda i: (0, 0)),         # b2
        ],
        out_specs=pl.BlockSpec((tb, O), lambda i: (i, 0)),
        compiler_params=pltpu.CompilerParams(
            dimension_semantics=("parallel",)),
        cost_estimate=cost,
    )(x_p, w1_p, b1_r, w2_r, b2_r)

    return out[:B]


def tdgammon_reference(x, w1, b1, w2, b2):
    """Pure-JAX reference matching the kernel's bf16-in / f32-accumulate math."""
    xb = x.astype(jnp.bfloat16).astype(jnp.float32)
    w1b = w1.astype(jnp.bfloat16).astype(jnp.float32)
    h = jax.nn.sigmoid(
        jnp.dot(xb, w1b, precision=jax.lax.Precision.HIGHEST)
        + b1.reshape(1, -1))
    y = jnp.sum(h * w2.T, axis=-1, keepdims=True) + b2.reshape(1, -1)
    return jax.nn.sigmoid(y)


if __name__ == "__main__":
    key = jax.random.PRNGKey(0)
    k_x, k_w1, k_b1, k_w2, k_b2, k_x2 = jax.random.split(key, 6)

    F, H, O = NUM_TDGAMMON_FEATURES, NUM_TDGAMMON1_HIDDEN, NUM_TDGAMMON_OUTPUT

    # Deterministic small random init (module zero-inits; see note above).
    w1 = jax.random.normal(k_w1, (F, H), dtype=jnp.float32) * 0.05
    b1 = jax.random.normal(k_b1, (1, H), dtype=jnp.float32) * 0.05
    w2 = jax.random.normal(k_w2, (H, O), dtype=jnp.float32) * 0.05
    b2 = jax.random.normal(k_b2, (1, O), dtype=jnp.float32) * 0.05

    # Small demo batch (matches the module's single-board usage).
    batch = 2
    x = jax.random.uniform(k_x, (batch, F), dtype=jnp.float32)
    out = jax.block_until_ready(tdgammon_forward(x, w1, b1, w2, b2))
    ref = tdgammon_reference(x, w1, b1, w2, b2)
    assert out.shape == (batch, O), out.shape
    assert jnp.allclose(out, ref, atol=1e-4, rtol=1e-4), (out, ref)

    # A second (still small) batch exercising the batch-padding / slicing path.
    batch2 = 333
    x2 = jax.random.uniform(k_x2, (batch2, F), dtype=jnp.float32)
    out2 = jax.block_until_ready(tdgammon_forward(x2, w1, b1, w2, b2))
    ref2 = tdgammon_reference(x2, w1, b1, w2, b2)
    assert out2.shape == (batch2, O), out2.shape
    assert jnp.allclose(out2, ref2, atol=1e-4, rtol=1e-4), (out2, ref2)

    # TODO(synk): update_weights (MSE backward + TD(lambda) eligibility traces)
    # is a host-side training procedure, not part of the forward hot path.
    print("KERNEL_OK")
</pallas_src>

<mosaic_0001>
module attributes {stable_mosaic.version = 11 : i64} {
  func.func @_tdgammon_kernel(%arg0: i32, %arg1: memref<8x256xbf16, #tpu.memory_space<vmem>>, %arg2: memref<256x40xbf16, #tpu.memory_space<vmem>>, %arg3: memref<1x40xf32, #tpu.memory_space<vmem>>, %arg4: memref<1x40xf32, #tpu.memory_space<vmem>>, %arg5: memref<1x1xf32, #tpu.memory_space<vmem>>, %arg6: memref<8x1xf32, #tpu.memory_space<vmem>>) attributes {dimension_semantics = [#tpu.dimension_semantics<parallel>], iteration_bounds = array<i64: 1>, scalar_prefetch = 0 : i64, scratch_operands = 0 : i64, tpu.core_type = #tpu.core_type<tc>, window_params = [{transform_indices = @transform_0, window_bounds = array<i64: 8, 256>}, {pipeline_mode = #tpu.pipeline_mode<synchronous>, transform_indices = @transform_1, window_bounds = array<i64: 256, 40>}, {pipeline_mode = #tpu.pipeline_mode<synchronous>, transform_indices = @transform_2, window_bounds = array<i64: 1, 40>}, {pipeline_mode = #tpu.pipeline_mode<synchronous>, transform_indices = @transform_3, window_bounds = array<i64: 1, 40>}, {pipeline_mode = #tpu.pipeline_mode<synchronous>, transform_indices = @transform_4, window_bounds = array<i64: 1, 1>}, {transform_indices = @transform_5, window_bounds = array<i64: 8, 1>}]} {
    %c0 = arith.constant 0 : index
    %c0_0 = arith.constant 0 : index
    %0 = vector.load %arg1[%c0, %c0_0] : memref<8x256xbf16, #tpu.memory_space<vmem>>, vector<8x256xbf16>
    %c0_1 = arith.constant 0 : index
    %c0_2 = arith.constant 0 : index
    %1 = vector.load %arg2[%c0_1, %c0_2] : memref<256x40xbf16, #tpu.memory_space<vmem>>, vector<256x40xbf16>
    %cst = arith.constant dense<0.000000e+00> : vector<8x40xf32>
    %2 = tpu.matmul %0, %1, %cst {dimension_numbers = #tpu.dot_dimension_numbers<[1], [0], [0], [1], [0, 0, 1, 1], [], []>} : vector<8x256xbf16>, vector<256x40xbf16>, vector<8x40xf32> -> vector<8x40xf32>
    %c0_3 = arith.constant 0 : index
    %c0_4 = arith.constant 0 : index
    %3 = vector.load %arg3[%c0_3, %c0_4] : memref<1x40xf32, #tpu.memory_space<vmem>>, vector<1x40xf32>
    %4 = vector.broadcast %3 : vector<1x40xf32> to vector<8x40xf32>
    %5 = arith.addf %2, %4 : vector<8x40xf32>
    %6 = arith.negf %5 : vector<8x40xf32>
    %7 = math.exp %6 : vector<8x40xf32>
    %cst_5 = arith.constant 1.000000e+00 : f32
    %8 = vector.broadcast %cst_5 : f32 to vector<8x40xf32>
    %9 = arith.addf %8, %7 : vector<8x40xf32>
    %10 = arith.divf %8, %9 : vector<8x40xf32>
    %c0_6 = arith.constant 0 : index
    %c0_7 = arith.constant 0 : index
    %11 = vector.load %arg4[%c0_6, %c0_7] : memref<1x40xf32, #tpu.memory_space<vmem>>, vector<1x40xf32>
    %12 = vector.broadcast %11 : vector<1x40xf32> to vector<8x40xf32>
    %13 = arith.mulf %10, %12 : vector<8x40xf32>
    %cst_8 = arith.constant dense<0.000000e+00> : vector<8xf32>
    %14 = vector.multi_reduction <add>, %13, %cst_8 [1] : vector<8x40xf32> to vector<8xf32>
    %15 = vector.shape_cast %14 : vector<8xf32> to vector<8x1xf32>
    %c0_9 = arith.constant 0 : index
    %c0_10 = arith.constant 0 : index
    %16 = vector.load %arg5[%c0_9, %c0_10] : memref<1x1xf32, #tpu.memory_space<vmem>>, vector<1x1xf32>
    %17 = vector.broadcast %16 : vector<1x1xf32> to vector<8x1xf32>
    %18 = arith.addf %15, %17 : vector<8x1xf32>
    %19 = arith.negf %18 : vector<8x1xf32>
    %20 = math.exp %19 : vector<8x1xf32>
    %cst_11 = arith.constant 1.000000e+00 : f32
    %21 = vector.broadcast %cst_11 : f32 to vector<8x1xf32>
    %22 = arith.addf %21, %20 : vector<8x1xf32>
    %23 = arith.divf %21, %22 : vector<8x1xf32>
    %c0_12 = arith.constant 0 : index
    %c0_13 = arith.constant 0 : index
    %24 = vector.load %arg6[%c0_12, %c0_13] : memref<8x1xf32, #tpu.memory_space<vmem>>, vector<8x1xf32>
    tpu.vector_store %arg6[%c0_12, %c0_13], %23 {strides = array<i32>} : memref<8x1xf32, #tpu.memory_space<vmem>>, vector<8x1xf32>,
    return
  }
  func.func @transform_0(%arg0: i32) -> (i32, i32) {
    %c0_i32 = arith.constant 0 : i32
    %c0_i32_0 = arith.constant 0 : i32
    return %arg0, %c0_i32 : i32, i32
  }
  func.func @transform_1(%arg0: i32) -> (i32, i32) {
    %c0_i32 = arith.constant 0 : i32
    %c0_i32_0 = arith.constant 0 : i32
    %c0_i32_1 = arith.constant 0 : i32
    return %c0_i32, %c0_i32_0 : i32, i32
  }
  func.func @transform_2(%arg0: i32) -> (i32, i32) {
    %c0_i32 = arith.constant 0 : i32
    %c0_i32_0 = arith.constant 0 : i32
    %c0_i32_1 = arith.constant 0 : i32
    return %c0_i32, %c0_i32_0 : i32, i32
  }
  func.func @transform_3(%arg0: i32) -> (i32, i32) {
    %c0_i32 = arith.constant 0 : i32
    %c0_i32_0 = arith.constant 0 : i32
    %c0_i32_1 = arith.constant 0 : i32
    return %c0_i32, %c0_i32_0 : i32, i32
  }
  func.func @transform_4(%arg0: i32) -> (i32, i32) {
    %c0_i32 = arith.constant 0 : i32
    %c0_i32_0 = arith.constant 0 : i32
    %c0_i32_1 = arith.constant 0 : i32
    return %c0_i32, %c0_i32_0 : i32, i32
  }
  func.func @transform_5(%arg0: i32) -> (i32, i32) {
    %c0_i32 = arith.constant 0 : i32
    %c0_i32_0 = arith.constant 0 : i32
    return %arg0, %c0_i32 : i32, i32
  }
}

</mosaic_0001>

<llo_original>
// kernel: tpu_custom_call.1
$region0: #{tpu_custom_call.1}
  #allocation0 [shape = 'u32[]', space=smem, size = 0x4, offset = 0x4, fixed_abs, tag = 'smem constant byte address 0x4 - core index']
  #allocation1 [shape = 'u32[72,128]{1,0:T(1,128)}', space=vmem, size = 0x9000, scoped, tag = 'internal scratch']
  #allocation2 [shape = 'f32[1,1]{1,0:T(1,128)S(1)}', space=vmem, size = 0x200, scoped, tag = 'scoped memory for tpu_custom_call.1']
  %s0 = inlined_call_operand.vmem [shape: bf16[8,256], index: 0, kind: input, shape index: {}]
  %s1 = inlined_call_operand.vmem [shape: bf16[256,40], index: 1, kind: input, shape index: {}]
  %s2 = inlined_call_operand.vmem [shape: f32[1,40], index: 2, kind: input, shape index: {}]
  %s3 = inlined_call_operand.vmem [shape: f32[1,40], index: 3, kind: input, shape index: {}]
  %s4 = inlined_call_operand.<no memory space> [shape: f32[1,1], index: 4, kind: input, shape index: {}]
  %s5 = inlined_call_operand.vmem [shape: f32[8,1], index: 5, kind: output, shape index: {}]
  %s6 = sld [smem:[#allocation0]]
  $region30: #{tpu_custom_call.1} parent=0
    _
  %s8 = ssub.s32 1, %s6
  %s9 = scalar_select 0, %s8, %s6
  %v10 = vstv %s4
  %11 = vst [vmem:[#allocation2] sm:$0x1] %v10
  // Predicated region
  $region2: #{tpu_custom_call.1} parent=0 // pred_check
    _
  $region3: #{tpu_custom_call.1} parent=0 // pred_check_branch
    %13 = sbr.rel (0) target = $region5
  $region4: #{tpu_custom_call.1} parent=0 // pred_region
    _
  $region5: #{tpu_custom_call.1} parent=0 // pred_fallthru
    _
  // Predicated region
  $region6: #{tpu_custom_call.1} parent=0 // pred_check
    _
  $region7: #{tpu_custom_call.1} parent=0 // pred_check_branch
    %15 = sbr.rel (0) target = $region9
  $region8: #{tpu_custom_call.1} parent=0 // pred_region
    _
  $region9: #{tpu_custom_call.1} parent=0 // pred_fallthru
    _
  // Predicated region
  $region10: #{tpu_custom_call.1} parent=0 // pred_check
    _
  $region11: #{tpu_custom_call.1} parent=0 // pred_check_branch
    %17 = sbr.rel (0) target = $region13
  $region12: #{tpu_custom_call.1} parent=0 // pred_region
    _
  $region13: #{tpu_custom_call.1} parent=0 // pred_fallthru
    _
  // Predicated region
  $region14: #{tpu_custom_call.1} parent=0 // pred_check
    _
  $region15: #{tpu_custom_call.1} parent=0 // pred_check_branch
    %19 = sbr.rel (0) target = $region17
  $region16: #{tpu_custom_call.1} parent=0 // pred_region
    _
  $region17: #{tpu_custom_call.1} parent=0 // pred_fallthru
    _
  // Predicated region
  $region18: #{tpu_custom_call.1} parent=0 // pred_check
    _
  $region19: #{tpu_custom_call.1} parent=0 // pred_check_branch
    %21 = sbr.rel (0) target = $region21
  $region20: #{tpu_custom_call.1} parent=0 // pred_region
    _
  $region21: #{tpu_custom_call.1} parent=0 // pred_fallthru
    _
  %v22 = vld [vmem:[%s0] sm:$0xff]
  %v23 = vld [vmem:[%s1] sm:$0xf]
  %v24 = vld [vmem:[%s1 + $0x4] sm:$0xf]
  %v25 = vld [vmem:[%s1 + $0x8] sm:$0xf]
  %v26 = vld [vmem:[%s1 + $0xc] sm:$0xf]
  %v27 = vld [vmem:[%s1 + $0x10] sm:$0xf]
  %v28 = vld [vmem:[%s1 + $0x14] sm:$0xf]
  %v29 = vld [vmem:[%s1 + $0x18] sm:$0xf]
  %v30 = vld [vmem:[%s1 + $0x1c] sm:$0xf]
  %v31 = vld [vmem:[%s1 + $0x20] sm:$0xf]
  %v32 = vld [vmem:[%s1 + $0x24] sm:$0xf]
  %v33 = vld [vmem:[%s1 + $0x28] sm:$0xf]
  %v34 = vld [vmem:[%s1 + $0x2c] sm:$0xf]
  %v35 = vld [vmem:[%s1 + $0x30] sm:$0xf]
  %v36 = vld [vmem:[%s1 + $0x34] sm:$0xf]
  %v37 = vld [vmem:[%s1 + $0x38] sm:$0xf]
  %v38 = vld [vmem:[%s1 + $0x3c] sm:$0xf]
  %v39 = vld [vmem:[%s1 + $0x40] sm:$0xf]
  %v40 = vld [vmem:[%s1 + $0x44] sm:$0xf]
  %v41 = vld [vmem:[%s1 + $0x48] sm:$0xf]
  %v42 = vld [vmem:[%s1 + $0x4c] sm:$0xf]
  %v43 = vld [vmem:[%s1 + $0x50] sm:$0xf]
  %v44 = vld [vmem:[%s1 + $0x54] sm:$0xf]
  %v45 = vld [vmem:[%s1 + $0x58] sm:$0xf]
  %v46 = vld [vmem:[%s1 + $0x5c] sm:$0xf]
  %v47 = vld [vmem:[%s1 + $0x60] sm:$0xf]
  %v48 = vld [vmem:[%s1 + $0x64] sm:$0xf]
  %v49 = vld [vmem:[%s1 + $0x68] sm:$0xf]
  %v50 = vld [vmem:[%s1 + $0x6c] sm:$0xf]
  %v51 = vld [vmem:[%s1 + $0x70] sm:$0xf]
  %v52 = vld [vmem:[%s1 + $0x74] sm:$0xf]
  %v53 = vld [vmem:[%s1 + $0x78] sm:$0xf]
  %v54 = vld [vmem:[%s1 + $0x7c] sm:$0xf]
  %v55 = vld [vmem:[%s2] sm:$0x1]
  %v57 = vperm.slane %v55, 0
  %v60 = vunpack.c.l.b16 %v22
  %v61 = vunpack.c.h.b16 %v22
  %v62 = vpack.c.b16 %v60, %v60
  %v63 = vpack.c.b16 %v61, %v61
  %v98 = vunpack.c.l.b16 %v23
  %v99 = vunpack.c.l.b16 %v24
  %v100 = vunpack.c.l.b16 %v25
  %v101 = vunpack.c.l.b16 %v26
  %v102 = vunpack.c.l.b16 %v27
  %v103 = vunpack.c.l.b16 %v28
  %v104 = vunpack.c.l.b16 %v29
  %v105 = vunpack.c.l.b16 %v30
  %v106 = vunpack.c.l.b16 %v31
  %v107 = vunpack.c.l.b16 %v32
  %v108 = vunpack.c.l.b16 %v33
  %v109 = vunpack.c.l.b16 %v34
  %v110 = vunpack.c.l.b16 %v35
  %v111 = vunpack.c.l.b16 %v36
  %v112 = vunpack.c.l.b16 %v37
  %v113 = vunpack.c.l.b16 %v38
  %v114 = vunpack.c.l.b16 %v39
  %v115 = vunpack.c.l.b16 %v40
  %v116 = vunpack.c.l.b16 %v41
  %v117 = vunpack.c.l.b16 %v42
  %v118 = vunpack.c.l.b16 %v43
  %v119 = vunpack.c.l.b16 %v44
  %v120 = vunpack.c.l.b16 %v45
  %v121 = vunpack.c.l.b16 %v46
  %v122 = vunpack.c.l.b16 %v47
  %v123 = vunpack.c.l.b16 %v48
  %v124 = vunpack.c.l.b16 %v49
  %v125 = vunpack.c.l.b16 %v50
  %v126 = vunpack.c.l.b16 %v51
  %v127 = vunpack.c.l.b16 %v52
  %v128 = vunpack.c.l.b16 %v53
  %v129 = vunpack.c.l.b16 %v54
  %v130 = vpack.c.b16 %v99, %v98
  %v131 = vpack.c.b16 %v101, %v100
  %v132 = vpack.c.b16 %v103, %v102
  %v133 = vpack.c.b16 %v105, %v104
  %v134 = vpack.c.b16 %v107, %v106
  %v135 = vpack.c.b16 %v109, %v108
  %v136 = vpack.c.b16 %v111, %v110
  %v137 = vpack.c.b16 %v113, %v112
  %v138 = vpack.c.b16 %v115, %v114
  %v139 = vpack.c.b16 %v117, %v116
  %v140 = vpack.c.b16 %v119, %v118
  %v141 = vpack.c.b16 %v121, %v120
  %v142 = vpack.c.b16 %v123, %v122
  %v143 = vpack.c.b16 %v125, %v124
  %v144 = vpack.c.b16 %v127, %v126
  %v145 = vpack.c.b16 %v129, %v128
  %162 = vmatpush.bf16.msra.mxu0 %v137
  %163 = vmatpush.bf16.msra.mxu0 %v136
  %164 = vmatpush.bf16.msra.mxu0 %v135
  %165 = vmatpush.bf16.msra.mxu0 %v134
  %166 = vmatpush.bf16.msra.mxu0 %v133
  %167 = vmatpush.bf16.msra.mxu0 %v132
  %168 = vmatpush.bf16.msra.mxu0 %v131
  %169 = vmatpush.bf16.msra.mxu0 %v130
  %170 = vmatmul.bf16.gmra.mxu0 %v62
  %v171 = vpop.f32.mrf.mxu0
  %v172 = vadd.f32 %v57, %v171
  %v173 = vpop.f32.mrf.mxu0
  %174 = vdwg.mxu0
  %175 = vmatpush.bf16.msra.mxu0 %v145
  %176 = vmatpush.bf16.msra.mxu0 %v144
  %177 = vmatpush.bf16.msra.mxu0 %v143
  %178 = vmatpush.bf16.msra.mxu0 %v142
  %179 = vmatpush.bf16.msra.mxu0 %v141
  %180 = vmatpush.bf16.msra.mxu0 %v140
  %181 = vmatpush.bf16.msra.mxu0 %v139
  %182 = vmatpush.bf16.msra.mxu0 %v138
  %183 = vmatmul.bf16.gmra.mxu0 %v63
  %v184 = vpop.f32.mrf.mxu0
  %v185 = vadd.f32 %v172, %v184
  %v186 = vpop.f32.mrf.mxu0
  %187 = vdwg.mxu0
  %v188 = vxor.u32 %v185, 2147483648
  %v189 = vmul.f32 %v188, 1.442695
  %v190 = vpow.pop %v189
  %v191 = vadd.f32 %v190, 1.0
  %v192 = vrcp.pop %v191
  %v193 = vmul.f32 %v191, %v192
  %v194 = vsub.f32 1.0, %v193
  %v195 = vmul.f32 %v192, %v194
  %v196 = vadd.f32 %v192, %v195
  %vm197 = vweird.f32 %v191
  %vm198 = vweird.f32 %v192
  %vm199 = vmor %vm197, %vm198
  %v200 = vsel %vm199, %v192, %v196
  %v201 = vand.u32 2147483647, %v191
  %vm202 = vcmp.eq.f32.partialorder %v201, 8.507059e+37
  %v203 = vand.u32 %v191, 2147483648
  %v204 = vor.u32 1.1754944e-38, %v203
  %v205 = vsel %vm202, %v204, %v200
  %v206 = vmul.f32 1.0, %v205
  %v207 = vld [vmem:[%s3] sm:$0x1]
  %v209 = vperm.slane %v207, 0
  %v211 = vmul.f32 %v206, %v209
  %vm212 = vcmask 326656
  %v213 = vsel %vm212, %v211, 0.0
  %214 = vadd.xlane.f32.xlu0 %v213
  %v215 = vpop.xlane.xlu0 %214
  %v216 = vld [vmem:[#allocation2] sm:$0x1]
  %v218 = vperm.slane %v216, 0
  %v220 = vadd.f32 %v215, %v218
  %v221 = vxor.u32 %v220, 2147483648
  %v222 = vmul.f32 %v221, 1.442695
  %v223 = vpow.pop %v222
  %v224 = vadd.f32 %v223, 1.0
  %v225 = vrcp.pop %v224
  %v226 = vmul.f32 %v224, %v225
  %v227 = vsub.f32 1.0, %v226
  %v228 = vmul.f32 %v225, %v227
  %v229 = vadd.f32 %v225, %v228
  %vm230 = vweird.f32 %v224
  %vm231 = vweird.f32 %v225
  %vm232 = vmor %vm230, %vm231
  %v233 = vsel %vm232, %v225, %v229
  %v234 = vand.u32 2147483647, %v224
  %vm235 = vcmp.eq.f32.partialorder %v234, 8.507059e+37
  %v236 = vand.u32 %v224, 2147483648
  %v237 = vor.u32 1.1754944e-38, %v236
  %v238 = vsel %vm235, %v237, %v233
  %v239 = vmul.f32 1.0, %v238
  %vm240 = vcmask 7168
  %241 = vst.msk [vmem:[%s5] sm:$0xff] %vm240, %v239
  // Predicated region
  $region22: #{tpu_custom_call.1} parent=0 // pred_check
    _
  $region23: #{tpu_custom_call.1} parent=0 // pred_check_branch
    %243 = sbr.rel (0) target = $region25
  $region24: #{tpu_custom_call.1} parent=0 // pred_region
    _
  $region25: #{tpu_custom_call.1} parent=0 // pred_fallthru
    _
  // Predicated region
  $region26: #{tpu_custom_call.1} parent=0 // pred_check
    _
  $region27: #{tpu_custom_call.1} parent=0 // pred_check_branch
    %245 = sbr.rel (0) target = $region29
  $region28: #{tpu_custom_call.1} parent=0 // pred_region
    _
  $region29: #{tpu_custom_call.1} parent=0 // pred_fallthru
    _

</llo_original>
